<compile_context>
chip_gen: v6e
topology: v6e:2x2x1
jax: 0.10.0
libtpu: 0.0.40
codegen_flags: <defaults>
</compile_context>

<pallas_src>
import functools

import jax
import jax.numpy as jnp
from jax.experimental import pallas as pl
from jax.experimental.pallas import tpu as pltpu


def _gap1d_kernel(x_ref, o_ref, acc_ref, *, s_total, s_folded, ts, h, fold):
    """x_ref: (TB, TS, Hf) tile; o_ref: (TB, H) tile; acc_ref: (TB, Hf) f32."""
    s = pl.program_id(1)

    @pl.when(s == 0)
    def _init():
        acc_ref[...] = jnp.zeros_like(acc_ref)

    x = x_ref[...]
    if s_folded % ts != 0:
        # Ragged final S tile: zero out rows past the true (folded) sequence end.
        row = jax.lax.broadcasted_iota(jnp.int32, x.shape, 1)
        x = jnp.where(row + s * ts < s_folded, x, jnp.zeros_like(x))

    # Streaming partial sum for this S tile, accumulated in f32 (no full-tile
    # f32 materialization of the input).
    acc_ref[...] += jnp.sum(x, axis=1, dtype=jnp.float32)

    @pl.when(s == pl.num_programs(1) - 1)
    def _finalize():
        acc = acc_ref[...]                      # (TB, Hf) with Hf = fold * H
        total = acc[:, 0:h]
        for g in range(1, fold):                # fold lane groups back to H
            total = total + acc[:, g * h:(g + 1) * h]
        o_ref[...] = (total * (1.0 / s_total)).astype(o_ref.dtype)


def global_average_pooling_1d(x: jax.Array, dim: int = 1) -> jax.Array:
    """torch.mean(x, dim=1) for a 3-D (B, S, H) input."""
    assert x.ndim == 3, "kernel implements mean over dim=1 of a (B, S, H) input"
    if dim < 0:
        dim += x.ndim
    assert dim == 1, "kernel implements mean over dim=1 of a (B, S, H) input"
    # TODO(synk): integer-dtype means (torch would return float) are not handled.
    assert jnp.issubdtype(x.dtype, jnp.floating), "float inputs only"

    B, S, H = x.shape
    itemsize = jnp.dtype(x.dtype).itemsize

    # --- Lane-density: pack `fold` consecutive seq rows into the lane dim. ---
    fold = 1
    if H < 128 and 128 % H == 0 and S % (128 // H) == 0:
        fold = 128 // H
    Sf = S // fold
    Hf = H * fold
    xk = x.reshape(B, Sf, Hf) if fold > 1 else x   # row-major: free reshape

    # --- Batch tile (second-to-last dim of the output block). ---
    if B <= 8 and B % 8 != 0:
        TB = B                       # full dim (allowed even if < 8)
    else:
        TB = 8                       # multiple of 8; padded tail rows are dropped

    # --- Sequence tile: ~4 MiB per input buffer (double-buffered by Pallas). ---
    target_bytes = 4 * 1024 * 1024
    ts_cap = max(8, (target_bytes // max(1, TB * Hf * itemsize)) // 8 * 8)
    TS = Sf if Sf <= ts_cap else ts_cap            # full dim, or multiple of 8

    grid = (pl.cdiv(B, TB), pl.cdiv(Sf, TS))       # (parallel, reduction)

    kernel = functools.partial(
        _gap1d_kernel, s_total=S, s_folded=Sf, ts=TS, h=H, fold=fold
    )

    return pl.pallas_call(
        kernel,
        out_shape=jax.ShapeDtypeStruct((B, H), x.dtype),
        grid_spec=pltpu.PrefetchScalarGridSpec(
            num_scalar_prefetch=0,
            grid=grid,
            in_specs=[pl.BlockSpec((TB, TS, Hf), lambda b, s: (b, s, 0))],
            out_specs=pl.BlockSpec((TB, H), lambda b, s: (b, 0)),
            scratch_shapes=[pltpu.VMEM((TB, Hf), jnp.float32)],
        ),
        compiler_params=pltpu.CompilerParams(
            dimension_semantics=("parallel", "arbitrary"),
            vmem_limit_bytes=32 * 1024 * 1024,
        ),
        cost_estimate=pl.CostEstimate(
            flops=B * S * H,
            transcendentals=0,
            bytes_accessed=B * S * H * itemsize + B * H * itemsize,
        ),
    )(xk)


if __name__ == "__main__":
    key = jax.random.PRNGKey(0)

    # Shapes implied by the module's usage: (batch, seq, hidden), mean over seq.
    B, S, H = 2, 8, 32
    x = jax.random.normal(key, (B, S, H), dtype=jnp.float32)

    out = global_average_pooling_1d(x, dim=1)
    out = jax.block_until_ready(out)

    ref = jnp.mean(x, axis=1)
    assert out.shape == (B, H) and out.dtype == x.dtype
    assert jnp.allclose(out, ref, atol=1e-5, rtol=1e-5)

    # Secondary check: a hidden size that cannot be lane-folded (fold == 1 path).
    x2 = jax.random.normal(jax.random.PRNGKey(1), (2, 10, 48), dtype=jnp.float32)
    out2 = jax.block_until_ready(global_average_pooling_1d(x2, dim=1))
    ref2 = jnp.mean(x2, axis=1)
    assert jnp.allclose(out2, ref2, atol=1e-5, rtol=1e-5)

    print("KERNEL_OK")
</pallas_src>

<mosaic_0001>
module attributes {stable_mosaic.version = 11 : i64} {
  func.func @_gap1d_kernel(%arg0: i32, %arg1: i32, %arg2: memref<2x2x128xf32, #tpu.memory_space<vmem>>, %arg3: memref<2x32xf32, #tpu.memory_space<vmem>>, %arg4: memref<2x128xf32, #tpu.memory_space<vmem>>) attributes {dimension_semantics = [#tpu.dimension_semantics<parallel>, #tpu.dimension_semantics<arbitrary>], iteration_bounds = array<i64: 1, 1>, scalar_prefetch = 0 : i64, scratch_operands = 1 : i64, tpu.core_type = #tpu.core_type<tc>, window_params = [{transform_indices = @transform_0, window_bounds = array<i64: 2, 2, 128>}, {transform_indices = @transform_1, window_bounds = array<i64: 2, 32>}]} {
    %c0_i32 = arith.constant 0 : i32
    %0 = arith.cmpi eq, %arg1, %c0_i32 : i32
    %1 = arith.extui %0 : i1 to i32
    %c0_i32_0 = arith.constant 0 : i32
    %2 = arith.cmpi ne, %1, %c0_i32_0 : i32
    scf.if %2 {
      %cst_9 = arith.constant 0.000000e+00 : f32
      %11 = vector.broadcast %cst_9 : f32 to vector<2x128xf32>
      %c0_10 = arith.constant 0 : index
      %c0_11 = arith.constant 0 : index
      %12 = vector.load %arg4[%c0_10, %c0_11] : memref<2x128xf32, #tpu.memory_space<vmem>>, vector<2x128xf32>
      tpu.vector_store %arg4[%c0_10, %c0_11], %11 {strides = array<i32>} : memref<2x128xf32, #tpu.memory_space<vmem>>, vector<2x128xf32>,
    } else {
    }
    %c0 = arith.constant 0 : index
    %c0_1 = arith.constant 0 : index
    %c0_2 = arith.constant 0 : index
    %3 = vector.load %arg2[%c0, %c0_1, %c0_2] : memref<2x2x128xf32, #tpu.memory_space<vmem>>, vector<2x2x128xf32>
    %c0_3 = arith.constant 0 : index
    %c0_4 = arith.constant 0 : index
    %4 = vector.load %arg4[%c0_3, %c0_4] : memref<2x128xf32, #tpu.memory_space<vmem>>, vector<2x128xf32>
    %cst = arith.constant dense<0.000000e+00> : vector<2x128xf32>
    %5 = vector.multi_reduction <add>, %3, %cst [1] : vector<2x2x128xf32> to vector<2x128xf32>
    %6 = arith.addf %4, %5 : vector<2x128xf32>
    %c0_5 = arith.constant 0 : index
    %c0_6 = arith.constant 0 : index
    %7 = vector.load %arg4[%c0_5, %c0_6] : memref<2x128xf32, #tpu.memory_space<vmem>>, vector<2x128xf32>
    tpu.vector_store %arg4[%c0_5, %c0_6], %6 {strides = array<i32>} : memref<2x128xf32, #tpu.memory_space<vmem>>, vector<2x128xf32>,
    %c0_i32_7 = arith.constant 0 : i32
    %8 = arith.cmpi eq, %arg1, %c0_i32_7 : i32
    %9 = arith.extui %8 : i1 to i32
    %c0_i32_8 = arith.constant 0 : i32
    %10 = arith.cmpi ne, %9, %c0_i32_8 : i32
    scf.if %10 {
      %c0_9 = arith.constant 0 : index
      %c0_10 = arith.constant 0 : index
      %11 = vector.load %arg4[%c0_9, %c0_10] : memref<2x128xf32, #tpu.memory_space<vmem>>, vector<2x128xf32>
      %12 = vector.extract_strided_slice %11 {offsets = [0, 0], sizes = [2, 32], strides = [1, 1]} : vector<2x128xf32> to vector<2x32xf32>
      %13 = vector.extract_strided_slice %11 {offsets = [0, 32], sizes = [2, 32], strides = [1, 1]} : vector<2x128xf32> to vector<2x32xf32>
      %14 = arith.addf %12, %13 : vector<2x32xf32>
      %15 = vector.extract_strided_slice %11 {offsets = [0, 64], sizes = [2, 32], strides = [1, 1]} : vector<2x128xf32> to vector<2x32xf32>
      %16 = arith.addf %14, %15 : vector<2x32xf32>
      %17 = vector.extract_strided_slice %11 {offsets = [0, 96], sizes = [2, 32], strides = [1, 1]} : vector<2x128xf32> to vector<2x32xf32>
      %18 = arith.addf %16, %17 : vector<2x32xf32>
      %cst_11 = arith.constant 1.250000e-01 : f32
      %19 = vector.broadcast %cst_11 : f32 to vector<2x32xf32>
      %20 = arith.mulf %18, %19 : vector<2x32xf32>
      %c0_12 = arith.constant 0 : index
      %c0_13 = arith.constant 0 : index
      %21 = vector.load %arg3[%c0_12, %c0_13] : memref<2x32xf32, #tpu.memory_space<vmem>>, vector<2x32xf32>
      tpu.vector_store %arg3[%c0_12, %c0_13], %20 {strides = array<i32>} : memref<2x32xf32, #tpu.memory_space<vmem>>, vector<2x32xf32>,
    } else {
    }
    return
  }
  func.func @transform_0(%arg0: i32, %arg1: i32) -> (i32, i32, i32) {
    %c0_i32 = arith.constant 0 : i32
    %c0_i32_0 = arith.constant 0 : i32
    return %arg0, %arg1, %c0_i32 : i32, i32, i32
  }
  func.func @transform_1(%arg0: i32, %arg1: i32) -> (i32, i32) {
    %c0_i32 = arith.constant 0 : i32
    %c0_i32_0 = arith.constant 0 : i32
    return %arg0, %c0_i32 : i32, i32
  }
}

</mosaic_0001>

<llo_original>
// kernel: tpu_custom_call.1
$region0: #{tpu_custom_call.1}
  #allocation0 [shape = 'u32[]', space=smem, size = 0x4, offset = 0x4, fixed_abs, tag = 'smem constant byte address 0x4 - core index']
  #allocation1 [shape = 'u32[144,128]{1,0:T(1,128)}', space=vmem, size = 0x12000, scoped, tag = 'internal scratch']
  #allocation2 [shape = 'f32[2,128]{1,0:T(2,128)}', space=vmem, size = 0x400, scoped, tag = 'scratch operand']
  %s0 = inlined_call_operand.hbm [shape: f32[2,2,128], index: 0, kind: input, shape index: {}]
  %s1 = inlined_call_operand.hbm [shape: f32[2,32], index: 1, kind: output, shape index: {}]
  %s2 = sld [smem:[#allocation0]]
  $region26: #{tpu_custom_call.1} parent=0
    _
  %s4 = ssub.s32 1, %s2
  %s5 = scalar_select 0, %s4, %s2
  $region1: #{tpu_custom_call.1} parent=0
    #allocation3 [shape = 'u8[2048]{0}', space=vmem, size = 0x800, scoped, tag = 'input window, operand 0, single buffered']
    #allocation4 [shape = 's32[1]{0}', space=sflag, size = 0x4, scoped, tag = 'scoped memory for tpu_custom_call.1']
    #allocation5 [shape = 's32[1]{0}', space=sflag, size = 0x4, scoped, tag = 'scoped memory for tpu_custom_call.1']
    #allocation6 [shape = 'u8[1024]{0}', space=vmem, size = 0x400, scoped, tag = 'output window, operand 0, single buffered']
    %6 = vsyncpa [#allocation4], 0
    %7 = vsyncpa [#allocation5], 0
    // Predicated region
    $region2: #{tpu_custom_call.1} parent=1 // pred_check
      _
    $region3: #{tpu_custom_call.1} parent=1 // pred_check_branch
      %9 = sbr.rel (0) target = $region5
    $region4: #{tpu_custom_call.1} parent=1 // pred_region
      %s11 = ssub.s32 64, 64
      %12 = vsyncadd [#allocation4], %s11
      %s13 = sshll.u32 [#allocation3], 4
      %s14 = int_to_ptr.vmem [resolvable:$true] %s13
      %19 = dma.hbm_to_vmem [thread:$0]  %s0, 64, %s14, [#allocation4], 32, 32, 2
    $region5: #{tpu_custom_call.1} parent=1 // pred_fallthru
      _
    // Predicated region
    $region6: #{tpu_custom_call.1} parent=1 // pred_check
      _
    $region7: #{tpu_custom_call.1} parent=1 // pred_check_branch
      %21 = sbr.rel (0) target = $region9
    $region8: #{tpu_custom_call.1} parent=1 // pred_region
      %22 = dma.done [#allocation4], 64
    $region9: #{tpu_custom_call.1} parent=1 // pred_fallthru
      _
    %p23 = scmp.eq.s32.totalorder 0, 0
    // Predicated region
    $region10: #{tpu_custom_call.1} parent=1 // pred_check
      %p24 = pneg %p23
    $region11: #{tpu_custom_call.1} parent=1 // pred_check_branch
      %26 = sbr.rel (%p24) target = $region13
    $region12: #{tpu_custom_call.1} parent=1 // pred_region
      %27 = vst [vmem:[#allocation2] sm:$0x3] 0.0
    $region13: #{tpu_custom_call.1} parent=1 // pred_fallthru
      _
    %v28 = vld [vmem:[#allocation3] sm:$0x3]
    %v29 = vld [vmem:[#allocation3 + $0x2] sm:$0x3]
    %v30 = vld [vmem:[#allocation2] sm:$0x3]
    %vm31 = vcmask 1041408
    %v32 = vsel %vm31, %v28, 0.0
    %v33 = vrot.slane %v32, 4
    %v34 = vadd.f32 %v32, %v33
    %v35 = vrot.slane %v34, 2
    %v36 = vadd.f32 %v34, %v35
    %v37 = vrot.slane %v36, 1
    %v38 = vadd.f32 %v36, %v37
    %v39 = vsel %vm31, %v29, 0.0
    %v40 = vrot.slane %v39, 4
    %v41 = vadd.f32 %v39, %v40
    %v42 = vrot.slane %v41, 2
    %v43 = vadd.f32 %v41, %v42
    %v44 = vrot.slane %v43, 1
    %v45 = vadd.f32 %v43, %v44
    %vm48 = vcmask 1041409
    %v49 = vsel %vm48, %v45, %v38
    %v51 = vadd.f32 %v30, %v49
    %52 = vst [vmem:[#allocation2] sm:$0x3] %v51
    // Predicated region
    $region14: #{tpu_custom_call.1} parent=1 // pred_check
      %p53 = pneg %p23
    $region15: #{tpu_custom_call.1} parent=1 // pred_check_branch
      %55 = sbr.rel (%p53) target = $region17
    $region16: #{tpu_custom_call.1} parent=1 // pred_region
      %v56 = vld [vmem:[#allocation2] sm:$0x3]
      %58 = vrot.lane.b32.xlu0 %v56, 96
      %v59 = vpop.permute.xlu0 %58
      %v61 = vadd.f32 %v56, %v59
      %62 = vrot.lane.b32.xlu0 %v56, 64
      %v63 = vpop.permute.xlu0 %62
      %v65 = vadd.f32 %v61, %v63
      %66 = vrot.lane.b32.xlu0 %v56, 32
      %v67 = vpop.permute.xlu0 %66
      %v69 = vadd.f32 %v65, %v67
      %v70 = vmul.f32 %v69, 0.125
      %vm71 = vcmask 254976
      %72 = vst.msk [vmem:[#allocation6] sm:$0x3] %vm71, %v70
    $region17: #{tpu_custom_call.1} parent=1 // pred_fallthru
      _
    // Predicated region
    $region18: #{tpu_custom_call.1} parent=1 // pred_check
      _
    $region19: #{tpu_custom_call.1} parent=1 // pred_check_branch
      %74 = sbr.rel (0) target = $region21
    $region20: #{tpu_custom_call.1} parent=1 // pred_region
      %s76 = ssub.s32 32, 32
      %77 = vsyncadd [#allocation5], %s76
      %s79 = sshll.u32 [#allocation6], 4
      %s80 = int_to_ptr.vmem [resolvable:$true] %s79
      %82 = dma.vmem_to_hbm [thread:$0]  %s80, 32, %s1, [#allocation5]
    $region21: #{tpu_custom_call.1} parent=1 // pred_fallthru
      _
    // Predicated region
    $region22: #{tpu_custom_call.1} parent=1 // pred_check
      _
    $region23: #{tpu_custom_call.1} parent=1 // pred_check_branch
      %84 = sbr.rel (0) target = $region25
    $region24: #{tpu_custom_call.1} parent=1 // pred_region
      %85 = dma.done [#allocation5], 32
    $region25: #{tpu_custom_call.1} parent=1 // pred_fallthru
      _
    %86 = vsyncpa [#allocation4], 1
    %87 = vsyncpa [#allocation5], 1

</llo_original>
